<compile_context>
chip_gen: v7x
topology: tpu7x:2x2x1
jax: 0.10.0
libtpu: 0.0.40
codegen_flags: <defaults>
</compile_context>

<pallas_src>
import jax
import jax.numpy as jnp
from jax.experimental import pallas as pl
from jax.experimental.pallas import tpu as pltpu

INPUT_SIZE = 10
HIDDEN_SIZE = 15
SEQ_LEN = 8
BATCH = 2
BPAD = 8  # batch rows padded to one full sublane group

# PyTorch gate rows are ordered (i, f, g, o).  Columns are repacked into groups
# (i, f, o, g), each group holding [fwd_H | bwd_H].  The i/f/o groups are
# pre-scaled by 0.5 so one tanh over all 8H columns gives sigmoid(z) as
# 0.5*tanh(z/2)+0.5 and tanh(z) directly for g.
_GATE_ORDER = (0, 1, 3, 2)          # (i, f, o, g) as PyTorch row-block indices
_GATE_SCALE = (0.5, 0.5, 0.5, 1.0)


def _bilstm_kernel(x2_ref, wih_ref, whh_ref, out_ref, hn_ref, cn_ref):
    """x2_ref:(T*BPAD, 2I+1)  wih_ref:(2I+1, 8H)  whh_ref:(2H, 8H)
       out_ref:(T, B, 2H)  hn_ref/cn_ref:(2, B, H)."""
    T, B, two_h = out_ref.shape
    H = two_h // 2

    # One MXU pass: input projection (+ bias row via the ones column) for all
    # timesteps and both directions.  Row block s holds [fwd inputs at t=s |
    # bwd inputs at t=T-1-s]; padded rows are all-zero.
    xg = jnp.dot(x2_ref[...], wih_ref[...],
                 preferred_element_type=jnp.float32)            # (T*BPAD, 8H)

    whh = whh_ref[...]                                          # (2H, 8H) block-diag

    # Recurrent state carried in registers: [h_fwd | h_bwd], [c_fwd | c_bwd].
    h = jnp.zeros((BPAD, 2 * H), jnp.float32)
    c = jnp.zeros((BPAD, 2 * H), jnp.float32)

    fwd_outs = []
    bwd_outs = []
    for s in range(T):                                          # static unroll (T=8)
        gates = (jnp.dot(h, whh, preferred_element_type=jnp.float32)
                 + xg[s * BPAD:(s + 1) * BPAD, :])              # (BPAD, 8H), vreg-aligned slice
        t_all = jnp.tanh(gates)                                 # single EUP pass over 8H
        ifo = 0.5 * t_all[:, :6 * H] + 0.5                      # sigmoid via tanh identity
        i_g = ifo[:, 0:2 * H]
        f_g = ifo[:, 2 * H:4 * H]
        o_g = ifo[:, 4 * H:6 * H]
        g_g = t_all[:, 6 * H:8 * H]
        c = f_g * c + i_g * g_g
        h = o_g * jnp.tanh(c)
        fwd_outs.append(h[:B, 0:H])                             # forward h_t,  t = s
        bwd_outs.append(h[:B, H:2 * H])                         # backward h_t, t = T-1-s

    # Consolidated stores (2 instead of 16 per-step masked partial stores).
    out_ref[:, :, 0:H] = jnp.stack(fwd_outs, axis=0)            # (T, B, H)
    out_ref[:, :, H:2 * H] = jnp.stack(bwd_outs[::-1], axis=0)  # reversed at trace time

    # At s = T-1 both directions' final states are the current carries.
    hn_ref[0] = h[:B, 0:H]
    hn_ref[1] = h[:B, H:2 * H]
    cn_ref[0] = c[:B, 0:H]
    cn_ref[1] = c[:B, H:2 * H]


def pack_params(w_ih, w_hh, b_ih, b_hh):
    """One-time packing of PyTorch-layout weights (call once, outside the hot path).

    Returns:
      wih_aug : (2I+1, 8H)  rows [0:I] multiply x[t] -> fwd cols; rows [I:2I]
                multiply x[T-1-t] -> bwd cols; row 2I is the folded bias.
      whh_p   : (2H, 8H)    block-diagonal recurrent weights.
    Column layout (8H): [i_f|i_b | f_f|f_b | o_f|o_b | g_f|g_b]; i/f/o columns
    are pre-scaled by 0.5 for the single-tanh activation trick.
    """
    H = w_hh.shape[-1]
    I = w_ih.shape[-1]
    b_sum = (b_ih + b_hh).astype(jnp.float32)                   # (2, 4H)
    wih_aug = jnp.zeros((2 * I + 1, 8 * H), jnp.float32)
    whh_p = jnp.zeros((2 * H, 8 * H), jnp.float32)
    for p, (g, sc) in enumerate(zip(_GATE_ORDER, _GATE_SCALE)):
        for d in range(2):                                      # 0 = fwd, 1 = bwd
            cs = (2 * p + d) * H
            wih_aug = wih_aug.at[d * I:(d + 1) * I, cs:cs + H].set(
                sc * w_ih[d, g * H:(g + 1) * H, :].T.astype(jnp.float32))
            wih_aug = wih_aug.at[2 * I, cs:cs + H].set(
                sc * b_sum[d, g * H:(g + 1) * H])
            whh_p = whh_p.at[d * H:(d + 1) * H, cs:cs + H].set(
                sc * w_hh[d, g * H:(g + 1) * H, :].T.astype(jnp.float32))
    return wih_aug, whh_p


def bilstm_forward(x, wih_aug, whh_p):
    """x:(T,B,I) f32; wih_aug:(2I+1,8H); whh_p:(2H,8H) — pre-packed by pack_params."""
    T, B, I = x.shape
    H = whh_p.shape[0] // 2

    # Pair each forward input x[t] with the backward input x[T-1-t], append the
    # ones column (bias row of wih_aug), and zero-pad batch 2 -> 8 so every
    # per-step xg slice in the kernel is one sublane-aligned vreg.
    xp = jnp.concatenate(
        [x.astype(jnp.float32),
         x[::-1].astype(jnp.float32),
         jnp.ones((T, B, 1), jnp.float32)], axis=-1)            # (T, B, 2I+1)
    x2 = jnp.zeros((T, BPAD, 2 * I + 1), jnp.float32).at[:, :B, :].set(xp)
    x2 = x2.reshape(T * BPAD, 2 * I + 1)

    vmem = pl.BlockSpec(memory_space=pltpu.MemorySpace.VMEM)
    out, hn, cn = pl.pallas_call(
        _bilstm_kernel,
        out_shape=(
            jax.ShapeDtypeStruct((T, B, 2 * H), jnp.float32),   # output (fused dirs)
            jax.ShapeDtypeStruct((2, B, H), jnp.float32),       # h_n
            jax.ShapeDtypeStruct((2, B, H), jnp.float32),       # c_n
        ),
        in_specs=[vmem, vmem, vmem],
        out_specs=(vmem, vmem, vmem),
    )(x2, wih_aug, whh_p)
    return out, hn, cn


def _reference(x, w_ih, w_hh, b_ih, b_hh):
    """Plain-JAX reference mirroring torch.nn.LSTM(bidirectional=True)."""
    T, B, _ = x.shape
    H = w_hh.shape[-1]

    def run(d, reverse):
        h = jnp.zeros((B, H), jnp.float32)
        c = jnp.zeros((B, H), jnp.float32)
        outs = {}
        order = range(T - 1, -1, -1) if reverse else range(T)
        for t in order:
            gates = x[t] @ w_ih[d].T + h @ w_hh[d].T + b_ih[d] + b_hh[d]
            i_g = jax.nn.sigmoid(gates[:, :H])
            f_g = jax.nn.sigmoid(gates[:, H:2 * H])
            g_g = jnp.tanh(gates[:, 2 * H:3 * H])
            o_g = jax.nn.sigmoid(gates[:, 3 * H:])
            c = f_g * c + i_g * g_g
            h = o_g * jnp.tanh(c)
            outs[t] = h
        out = jnp.stack([outs[t] for t in range(T)], axis=0)
        return out, h, c

    of, hf, cf = run(0, False)
    ob, hb, cb = run(1, True)
    return (jnp.concatenate([of, ob], axis=-1),
            jnp.stack([hf, hb], axis=0),
            jnp.stack([cf, cb], axis=0))


if __name__ == "__main__":
    H, I = HIDDEN_SIZE, INPUT_SIZE
    key = jax.random.PRNGKey(0)
    kx, k1, k2, k3, k4 = jax.random.split(key, 5)

    # Deterministic parameter init matching PyTorch's U(-1/sqrt(H), 1/sqrt(H)).
    k = 1.0 / jnp.sqrt(jnp.float32(H))
    w_ih = jax.random.uniform(k1, (2, 4 * H, I), jnp.float32, -k, k)
    w_hh = jax.random.uniform(k2, (2, 4 * H, H), jnp.float32, -k, k)
    b_ih = jax.random.uniform(k3, (2, 4 * H), jnp.float32, -k, k)
    b_hh = jax.random.uniform(k4, (2, 4 * H), jnp.float32, -k, k)

    x = jax.random.normal(kx, (SEQ_LEN, BATCH, I), jnp.float32)

    # Pack once (setup time), then the jitted forward takes packed operands.
    wih_aug, whh_p = pack_params(w_ih, w_hh, b_ih, b_hh)
    forward = jax.jit(bilstm_forward)

    output, hidden, cell = forward(x, wih_aug, whh_p)
    jax.block_until_ready((output, hidden, cell))

    out_ref, hid_ref, cell_ref = _reference(x, w_ih, w_hh, b_ih, b_hh)
    assert output.shape == (SEQ_LEN, BATCH, 2 * H)
    assert hidden.shape == (2, BATCH, H) and cell.shape == (2, BATCH, H)
    assert jnp.allclose(output, out_ref, atol=2e-5, rtol=2e-5)
    assert jnp.allclose(hidden, hid_ref, atol=2e-5, rtol=2e-5)
    assert jnp.allclose(cell, cell_ref, atol=2e-5, rtol=2e-5)

    print("KERNEL_OK")
</pallas_src>

<mosaic_0001>
module attributes {stable_mosaic.version = 11 : i64} {
  func.func @_bilstm_kernel(%arg0: memref<64x21xf32, #tpu.memory_space<vmem>>, %arg1: memref<21x120xf32, #tpu.memory_space<vmem>>, %arg2: memref<30x120xf32, #tpu.memory_space<vmem>>, %arg3: memref<8x2x30xf32, #tpu.memory_space<vmem>>, %arg4: memref<2x2x15xf32, #tpu.memory_space<vmem>>, %arg5: memref<2x2x15xf32, #tpu.memory_space<vmem>>) attributes {dimension_semantics = [], scalar_prefetch = 0 : i64, scratch_operands = 0 : i64, tpu.core_type = #tpu.core_type<tc>} {
    %c0 = arith.constant 0 : index
    %c0_0 = arith.constant 0 : index
    %0 = vector.load %arg0[%c0, %c0_0] : memref<64x21xf32, #tpu.memory_space<vmem>>, vector<64x21xf32>
    %c0_1 = arith.constant 0 : index
    %c0_2 = arith.constant 0 : index
    %1 = vector.load %arg1[%c0_1, %c0_2] : memref<21x120xf32, #tpu.memory_space<vmem>>, vector<21x120xf32>
    %cst = arith.constant dense<0.000000e+00> : vector<64x120xf32>
    %2 = tpu.matmul %0, %1, %cst {dimension_numbers = #tpu.dot_dimension_numbers<[1], [0], [0], [1], [0, 0, 1, 1], [], []>} : vector<64x21xf32>, vector<21x120xf32>, vector<64x120xf32> -> vector<64x120xf32>
    %c0_3 = arith.constant 0 : index
    %c0_4 = arith.constant 0 : index
    %3 = vector.load %arg2[%c0_3, %c0_4] : memref<30x120xf32, #tpu.memory_space<vmem>>, vector<30x120xf32>
    %cst_5 = arith.constant 0.000000e+00 : f32
    %4 = vector.broadcast %cst_5 : f32 to vector<8x30xf32>
    %cst_6 = arith.constant 0.000000e+00 : f32
    %5 = vector.broadcast %cst_6 : f32 to vector<8x30xf32>
    %cst_7 = arith.constant dense<0.000000e+00> : vector<8x120xf32>
    %6 = tpu.matmul %4, %3, %cst_7 {dimension_numbers = #tpu.dot_dimension_numbers<[1], [0], [0], [1], [0, 0, 1, 1], [], []>} : vector<8x30xf32>, vector<30x120xf32>, vector<8x120xf32> -> vector<8x120xf32>
    %7 = vector.extract_strided_slice %2 {offsets = [0, 0], sizes = [8, 120], strides = [1, 1]} : vector<64x120xf32> to vector<8x120xf32>
    %8 = arith.addf %6, %7 : vector<8x120xf32>
    %9 = math.tanh %8 : vector<8x120xf32>
    %10 = vector.extract_strided_slice %9 {offsets = [0, 0], sizes = [8, 90], strides = [1, 1]} : vector<8x120xf32> to vector<8x90xf32>
    %cst_8 = arith.constant 5.000000e-01 : f32
    %11 = vector.broadcast %cst_8 : f32 to vector<8x90xf32>
    %12 = arith.mulf %11, %10 : vector<8x90xf32>
    %cst_9 = arith.constant 5.000000e-01 : f32
    %13 = vector.broadcast %cst_9 : f32 to vector<8x90xf32>
    %14 = arith.addf %12, %13 : vector<8x90xf32>
    %15 = vector.extract_strided_slice %14 {offsets = [0, 0], sizes = [8, 30], strides = [1, 1]} : vector<8x90xf32> to vector<8x30xf32>
    %16 = vector.extract_strided_slice %14 {offsets = [0, 30], sizes = [8, 30], strides = [1, 1]} : vector<8x90xf32> to vector<8x30xf32>
    %17 = vector.extract_strided_slice %14 {offsets = [0, 60], sizes = [8, 30], strides = [1, 1]} : vector<8x90xf32> to vector<8x30xf32>
    %18 = vector.extract_strided_slice %9 {offsets = [0, 90], sizes = [8, 30], strides = [1, 1]} : vector<8x120xf32> to vector<8x30xf32>
    %19 = arith.mulf %16, %5 : vector<8x30xf32>
    %20 = arith.mulf %15, %18 : vector<8x30xf32>
    %21 = arith.addf %19, %20 : vector<8x30xf32>
    %22 = math.tanh %21 : vector<8x30xf32>
    %23 = arith.mulf %17, %22 : vector<8x30xf32>
    %24 = vector.extract_strided_slice %23 {offsets = [0, 0], sizes = [2, 15], strides = [1, 1]} : vector<8x30xf32> to vector<2x15xf32>
    %25 = vector.extract_strided_slice %23 {offsets = [0, 15], sizes = [2, 15], strides = [1, 1]} : vector<8x30xf32> to vector<2x15xf32>
    %cst_10 = arith.constant dense<0.000000e+00> : vector<8x120xf32>
    %26 = tpu.matmul %23, %3, %cst_10 {dimension_numbers = #tpu.dot_dimension_numbers<[1], [0], [0], [1], [0, 0, 1, 1], [], []>} : vector<8x30xf32>, vector<30x120xf32>, vector<8x120xf32> -> vector<8x120xf32>
    %27 = vector.extract_strided_slice %2 {offsets = [8, 0], sizes = [8, 120], strides = [1, 1]} : vector<64x120xf32> to vector<8x120xf32>
    %28 = arith.addf %26, %27 : vector<8x120xf32>
    %29 = math.tanh %28 : vector<8x120xf32>
    %30 = vector.extract_strided_slice %29 {offsets = [0, 0], sizes = [8, 90], strides = [1, 1]} : vector<8x120xf32> to vector<8x90xf32>
    %cst_11 = arith.constant 5.000000e-01 : f32
    %31 = vector.broadcast %cst_11 : f32 to vector<8x90xf32>
    %32 = arith.mulf %31, %30 : vector<8x90xf32>
    %cst_12 = arith.constant 5.000000e-01 : f32
    %33 = vector.broadcast %cst_12 : f32 to vector<8x90xf32>
    %34 = arith.addf %32, %33 : vector<8x90xf32>
    %35 = vector.extract_strided_slice %34 {offsets = [0, 0], sizes = [8, 30], strides = [1, 1]} : vector<8x90xf32> to vector<8x30xf32>
    %36 = vector.extract_strided_slice %34 {offsets = [0, 30], sizes = [8, 30], strides = [1, 1]} : vector<8x90xf32> to vector<8x30xf32>
    %37 = vector.extract_strided_slice %34 {offsets = [0, 60], sizes = [8, 30], strides = [1, 1]} : vector<8x90xf32> to vector<8x30xf32>
    %38 = vector.extract_strided_slice %29 {offsets = [0, 90], sizes = [8, 30], strides = [1, 1]} : vector<8x120xf32> to vector<8x30xf32>
    %39 = arith.mulf %36, %21 : vector<8x30xf32>
    %40 = arith.mulf %35, %38 : vector<8x30xf32>
    %41 = arith.addf %39, %40 : vector<8x30xf32>
    %42 = math.tanh %41 : vector<8x30xf32>
    %43 = arith.mulf %37, %42 : vector<8x30xf32>
    %44 = vector.extract_strided_slice %43 {offsets = [0, 0], sizes = [2, 15], strides = [1, 1]} : vector<8x30xf32> to vector<2x15xf32>
    %45 = vector.extract_strided_slice %43 {offsets = [0, 15], sizes = [2, 15], strides = [1, 1]} : vector<8x30xf32> to vector<2x15xf32>
    %cst_13 = arith.constant dense<0.000000e+00> : vector<8x120xf32>
    %46 = tpu.matmul %43, %3, %cst_13 {dimension_numbers = #tpu.dot_dimension_numbers<[1], [0], [0], [1], [0, 0, 1, 1], [], []>} : vector<8x30xf32>, vector<30x120xf32>, vector<8x120xf32> -> vector<8x120xf32>
    %47 = vector.extract_strided_slice %2 {offsets = [16, 0], sizes = [8, 120], strides = [1, 1]} : vector<64x120xf32> to vector<8x120xf32>
    %48 = arith.addf %46, %47 : vector<8x120xf32>
    %49 = math.tanh %48 : vector<8x120xf32>
    %50 = vector.extract_strided_slice %49 {offsets = [0, 0], sizes = [8, 90], strides = [1, 1]} : vector<8x120xf32> to vector<8x90xf32>
    %cst_14 = arith.constant 5.000000e-01 : f32
    %51 = vector.broadcast %cst_14 : f32 to vector<8x90xf32>
    %52 = arith.mulf %51, %50 : vector<8x90xf32>
    %cst_15 = arith.constant 5.000000e-01 : f32
    %53 = vector.broadcast %cst_15 : f32 to vector<8x90xf32>
    %54 = arith.addf %52, %53 : vector<8x90xf32>
    %55 = vector.extract_strided_slice %54 {offsets = [0, 0], sizes = [8, 30], strides = [1, 1]} : vector<8x90xf32> to vector<8x30xf32>
    %56 = vector.extract_strided_slice %54 {offsets = [0, 30], sizes = [8, 30], strides = [1, 1]} : vector<8x90xf32> to vector<8x30xf32>
    %57 = vector.extract_strided_slice %54 {offsets = [0, 60], sizes = [8, 30], strides = [1, 1]} : vector<8x90xf32> to vector<8x30xf32>
    %58 = vector.extract_strided_slice %49 {offsets = [0, 90], sizes = [8, 30], strides = [1, 1]} : vector<8x120xf32> to vector<8x30xf32>
    %59 = arith.mulf %56, %41 : vector<8x30xf32>
    %60 = arith.mulf %55, %58 : vector<8x30xf32>
    %61 = arith.addf %59, %60 : vector<8x30xf32>
    %62 = math.tanh %61 : vector<8x30xf32>
    %63 = arith.mulf %57, %62 : vector<8x30xf32>
    %64 = vector.extract_strided_slice %63 {offsets = [0, 0], sizes = [2, 15], strides = [1, 1]} : vector<8x30xf32> to vector<2x15xf32>
    %65 = vector.extract_strided_slice %63 {offsets = [0, 15], sizes = [2, 15], strides = [1, 1]} : vector<8x30xf32> to vector<2x15xf32>
    %cst_16 = arith.constant dense<0.000000e+00> : vector<8x120xf32>
    %66 = tpu.matmul %63, %3, %cst_16 {dimension_numbers = #tpu.dot_dimension_numbers<[1], [0], [0], [1], [0, 0, 1, 1], [], []>} : vector<8x30xf32>, vector<30x120xf32>, vector<8x120xf32> -> vector<8x120xf32>
    %67 = vector.extract_strided_slice %2 {offsets = [24, 0], sizes = [8, 120], strides = [1, 1]} : vector<64x120xf32> to vector<8x120xf32>
    %68 = arith.addf %66, %67 : vector<8x120xf32>
    %69 = math.tanh %68 : vector<8x120xf32>
    %70 = vector.extract_strided_slice %69 {offsets = [0, 0], sizes = [8, 90], strides = [1, 1]} : vector<8x120xf32> to vector<8x90xf32>
    %cst_17 = arith.constant 5.000000e-01 : f32
    %71 = vector.broadcast %cst_17 : f32 to vector<8x90xf32>
    %72 = arith.mulf %71, %70 : vector<8x90xf32>
    %cst_18 = arith.constant 5.000000e-01 : f32
    %73 = vector.broadcast %cst_18 : f32 to vector<8x90xf32>
    %74 = arith.addf %72, %73 : vector<8x90xf32>
    %75 = vector.extract_strided_slice %74 {offsets = [0, 0], sizes = [8, 30], strides = [1, 1]} : vector<8x90xf32> to vector<8x30xf32>
    %76 = vector.extract_strided_slice %74 {offsets = [0, 30], sizes = [8, 30], strides = [1, 1]} : vector<8x90xf32> to vector<8x30xf32>
    %77 = vector.extract_strided_slice %74 {offsets = [0, 60], sizes = [8, 30], strides = [1, 1]} : vector<8x90xf32> to vector<8x30xf32>
    %78 = vector.extract_strided_slice %69 {offsets = [0, 90], sizes = [8, 30], strides = [1, 1]} : vector<8x120xf32> to vector<8x30xf32>
    %79 = arith.mulf %76, %61 : vector<8x30xf32>
    %80 = arith.mulf %75, %78 : vector<8x30xf32>
    %81 = arith.addf %79, %80 : vector<8x30xf32>
    %82 = math.tanh %81 : vector<8x30xf32>
    %83 = arith.mulf %77, %82 : vector<8x30xf32>
    %84 = vector.extract_strided_slice %83 {offsets = [0, 0], sizes = [2, 15], strides = [1, 1]} : vector<8x30xf32> to vector<2x15xf32>
    %85 = vector.extract_strided_slice %83 {offsets = [0, 15], sizes = [2, 15], strides = [1, 1]} : vector<8x30xf32> to vector<2x15xf32>
    %cst_19 = arith.constant dense<0.000000e+00> : vector<8x120xf32>
    %86 = tpu.matmul %83, %3, %cst_19 {dimension_numbers = #tpu.dot_dimension_numbers<[1], [0], [0], [1], [0, 0, 1, 1], [], []>} : vector<8x30xf32>, vector<30x120xf32>, vector<8x120xf32> -> vector<8x120xf32>
    %87 = vector.extract_strided_slice %2 {offsets = [32, 0], sizes = [8, 120], strides = [1, 1]} : vector<64x120xf32> to vector<8x120xf32>
    %88 = arith.addf %86, %87 : vector<8x120xf32>
    %89 = math.tanh %88 : vector<8x120xf32>
    %90 = vector.extract_strided_slice %89 {offsets = [0, 0], sizes = [8, 90], strides = [1, 1]} : vector<8x120xf32> to vector<8x90xf32>
    %cst_20 = arith.constant 5.000000e-01 : f32
    %91 = vector.broadcast %cst_20 : f32 to vector<8x90xf32>
    %92 = arith.mulf %91, %90 : vector<8x90xf32>
    %cst_21 = arith.constant 5.000000e-01 : f32
    %93 = vector.broadcast %cst_21 : f32 to vector<8x90xf32>
    %94 = arith.addf %92, %93 : vector<8x90xf32>
    %95 = vector.extract_strided_slice %94 {offsets = [0, 0], sizes = [8, 30], strides = [1, 1]} : vector<8x90xf32> to vector<8x30xf32>
    %96 = vector.extract_strided_slice %94 {offsets = [0, 30], sizes = [8, 30], strides = [1, 1]} : vector<8x90xf32> to vector<8x30xf32>
    %97 = vector.extract_strided_slice %94 {offsets = [0, 60], sizes = [8, 30], strides = [1, 1]} : vector<8x90xf32> to vector<8x30xf32>
    %98 = vector.extract_strided_slice %89 {offsets = [0, 90], sizes = [8, 30], strides = [1, 1]} : vector<8x120xf32> to vector<8x30xf32>
    %99 = arith.mulf %96, %81 : vector<8x30xf32>
    %100 = arith.mulf %95, %98 : vector<8x30xf32>
    %101 = arith.addf %99, %100 : vector<8x30xf32>
    %102 = math.tanh %101 : vector<8x30xf32>
    %103 = arith.mulf %97, %102 : vector<8x30xf32>
    %104 = vector.extract_strided_slice %103 {offsets = [0, 0], sizes = [2, 15], strides = [1, 1]} : vector<8x30xf32> to vector<2x15xf32>
    %105 = vector.extract_strided_slice %103 {offsets = [0, 15], sizes = [2, 15], strides = [1, 1]} : vector<8x30xf32> to vector<2x15xf32>
    %cst_22 = arith.constant dense<0.000000e+00> : vector<8x120xf32>
    %106 = tpu.matmul %103, %3, %cst_22 {dimension_numbers = #tpu.dot_dimension_numbers<[1], [0], [0], [1], [0, 0, 1, 1], [], []>} : vector<8x30xf32>, vector<30x120xf32>, vector<8x120xf32> -> vector<8x120xf32>
    %107 = vector.extract_strided_slice %2 {offsets = [40, 0], sizes = [8, 120], strides = [1, 1]} : vector<64x120xf32> to vector<8x120xf32>
    %108 = arith.addf %106, %107 : vector<8x120xf32>
    %109 = math.tanh %108 : vector<8x120xf32>
    %110 = vector.extract_strided_slice %109 {offsets = [0, 0], sizes = [8, 90], strides = [1, 1]} : vector<8x120xf32> to vector<8x90xf32>
    %cst_23 = arith.constant 5.000000e-01 : f32
    %111 = vector.broadcast %cst_23 : f32 to vector<8x90xf32>
    %112 = arith.mulf %111, %110 : vector<8x90xf32>
    %cst_24 = arith.constant 5.000000e-01 : f32
    %113 = vector.broadcast %cst_24 : f32 to vector<8x90xf32>
    %114 = arith.addf %112, %113 : vector<8x90xf32>
    %115 = vector.extract_strided_slice %114 {offsets = [0, 0], sizes = [8, 30], strides = [1, 1]} : vector<8x90xf32> to vector<8x30xf32>
    %116 = vector.extract_strided_slice %114 {offsets = [0, 30], sizes = [8, 30], strides = [1, 1]} : vector<8x90xf32> to vector<8x30xf32>
    %117 = vector.extract_strided_slice %114 {offsets = [0, 60], sizes = [8, 30], strides = [1, 1]} : vector<8x90xf32> to vector<8x30xf32>
    %118 = vector.extract_strided_slice %109 {offsets = [0, 90], sizes = [8, 30], strides = [1, 1]} : vector<8x120xf32> to vector<8x30xf32>
    %119 = arith.mulf %116, %101 : vector<8x30xf32>
    %120 = arith.mulf %115, %118 : vector<8x30xf32>
    %121 = arith.addf %119, %120 : vector<8x30xf32>
    %122 = math.tanh %121 : vector<8x30xf32>
    %123 = arith.mulf %117, %122 : vector<8x30xf32>
    %124 = vector.extract_strided_slice %123 {offsets = [0, 0], sizes = [2, 15], strides = [1, 1]} : vector<8x30xf32> to vector<2x15xf32>
    %125 = vector.extract_strided_slice %123 {offsets = [0, 15], sizes = [2, 15], strides = [1, 1]} : vector<8x30xf32> to vector<2x15xf32>
    %cst_25 = arith.constant dense<0.000000e+00> : vector<8x120xf32>
    %126 = tpu.matmul %123, %3, %cst_25 {dimension_numbers = #tpu.dot_dimension_numbers<[1], [0], [0], [1], [0, 0, 1, 1], [], []>} : vector<8x30xf32>, vector<30x120xf32>, vector<8x120xf32> -> vector<8x120xf32>
    %127 = vector.extract_strided_slice %2 {offsets = [48, 0], sizes = [8, 120], strides = [1, 1]} : vector<64x120xf32> to vector<8x120xf32>
    %128 = arith.addf %126, %127 : vector<8x120xf32>
    %129 = math.tanh %128 : vector<8x120xf32>
    %130 = vector.extract_strided_slice %129 {offsets = [0, 0], sizes = [8, 90], strides = [1, 1]} : vector<8x120xf32> to vector<8x90xf32>
    %cst_26 = arith.constant 5.000000e-01 : f32
    %131 = vector.broadcast %cst_26 : f32 to vector<8x90xf32>
    %132 = arith.mulf %131, %130 : vector<8x90xf32>
    %cst_27 = arith.constant 5.000000e-01 : f32
    %133 = vector.broadcast %cst_27 : f32 to vector<8x90xf32>
    %134 = arith.addf %132, %133 : vector<8x90xf32>
    %135 = vector.extract_strided_slice %134 {offsets = [0, 0], sizes = [8, 30], strides = [1, 1]} : vector<8x90xf32> to vector<8x30xf32>
    %136 = vector.extract_strided_slice %134 {offsets = [0, 30], sizes = [8, 30], strides = [1, 1]} : vector<8x90xf32> to vector<8x30xf32>
    %137 = vector.extract_strided_slice %134 {offsets = [0, 60], sizes = [8, 30], strides = [1, 1]} : vector<8x90xf32> to vector<8x30xf32>
    %138 = vector.extract_strided_slice %129 {offsets = [0, 90], sizes = [8, 30], strides = [1, 1]} : vector<8x120xf32> to vector<8x30xf32>
    %139 = arith.mulf %136, %121 : vector<8x30xf32>
    %140 = arith.mulf %135, %138 : vector<8x30xf32>
    %141 = arith.addf %139, %140 : vector<8x30xf32>
    %142 = math.tanh %141 : vector<8x30xf32>
    %143 = arith.mulf %137, %142 : vector<8x30xf32>
    %144 = vector.extract_strided_slice %143 {offsets = [0, 0], sizes = [2, 15], strides = [1, 1]} : vector<8x30xf32> to vector<2x15xf32>
    %145 = vector.extract_strided_slice %143 {offsets = [0, 15], sizes = [2, 15], strides = [1, 1]} : vector<8x30xf32> to vector<2x15xf32>
    %cst_28 = arith.constant dense<0.000000e+00> : vector<8x120xf32>
    %146 = tpu.matmul %143, %3, %cst_28 {dimension_numbers = #tpu.dot_dimension_numbers<[1], [0], [0], [1], [0, 0, 1, 1], [], []>} : vector<8x30xf32>, vector<30x120xf32>, vector<8x120xf32> -> vector<8x120xf32>
    %147 = vector.extract_strided_slice %2 {offsets = [56, 0], sizes = [8, 120], strides = [1, 1]} : vector<64x120xf32> to vector<8x120xf32>
    %148 = arith.addf %146, %147 : vector<8x120xf32>
    %149 = math.tanh %148 : vector<8x120xf32>
    %150 = vector.extract_strided_slice %149 {offsets = [0, 0], sizes = [8, 90], strides = [1, 1]} : vector<8x120xf32> to vector<8x90xf32>
    %cst_29 = arith.constant 5.000000e-01 : f32
    %151 = vector.broadcast %cst_29 : f32 to vector<8x90xf32>
    %152 = arith.mulf %151, %150 : vector<8x90xf32>
    %cst_30 = arith.constant 5.000000e-01 : f32
    %153 = vector.broadcast %cst_30 : f32 to vector<8x90xf32>
    %154 = arith.addf %152, %153 : vector<8x90xf32>
    %155 = vector.extract_strided_slice %154 {offsets = [0, 0], sizes = [8, 30], strides = [1, 1]} : vector<8x90xf32> to vector<8x30xf32>
    %156 = vector.extract_strided_slice %154 {offsets = [0, 30], sizes = [8, 30], strides = [1, 1]} : vector<8x90xf32> to vector<8x30xf32>
    %157 = vector.extract_strided_slice %154 {offsets = [0, 60], sizes = [8, 30], strides = [1, 1]} : vector<8x90xf32> to vector<8x30xf32>
    %158 = vector.extract_strided_slice %149 {offsets = [0, 90], sizes = [8, 30], strides = [1, 1]} : vector<8x120xf32> to vector<8x30xf32>
    %159 = arith.mulf %156, %141 : vector<8x30xf32>
    %160 = arith.mulf %155, %158 : vector<8x30xf32>
    %161 = arith.addf %159, %160 : vector<8x30xf32>
    %162 = math.tanh %161 : vector<8x30xf32>
    %163 = arith.mulf %157, %162 : vector<8x30xf32>
    %164 = vector.extract_strided_slice %163 {offsets = [0, 0], sizes = [2, 15], strides = [1, 1]} : vector<8x30xf32> to vector<2x15xf32>
    %165 = vector.extract_strided_slice %163 {offsets = [0, 15], sizes = [2, 15], strides = [1, 1]} : vector<8x30xf32> to vector<2x15xf32>
    %166 = vector.shape_cast %24 : vector<2x15xf32> to vector<1x2x15xf32>
    %167 = vector.shape_cast %44 : vector<2x15xf32> to vector<1x2x15xf32>
    %168 = vector.shape_cast %64 : vector<2x15xf32> to vector<1x2x15xf32>
    %169 = vector.shape_cast %84 : vector<2x15xf32> to vector<1x2x15xf32>
    %170 = vector.shape_cast %104 : vector<2x15xf32> to vector<1x2x15xf32>
    %171 = vector.shape_cast %124 : vector<2x15xf32> to vector<1x2x15xf32>
    %172 = vector.shape_cast %144 : vector<2x15xf32> to vector<1x2x15xf32>
    %173 = vector.shape_cast %164 : vector<2x15xf32> to vector<1x2x15xf32>
    %174 = tpu.concatenate %166, %167, %168, %169, %170, %171, %172, %173 in 0 : vector<1x2x15xf32>, vector<1x2x15xf32>, vector<1x2x15xf32>, vector<1x2x15xf32>, vector<1x2x15xf32>, vector<1x2x15xf32>, vector<1x2x15xf32>, vector<1x2x15xf32> -> vector<8x2x15xf32>
    %c0_31 = arith.constant 0 : index
    %c0_32 = arith.constant 0 : index
    %c0_33 = arith.constant 0 : index
    %175 = vector.load %arg3[%c0_31, %c0_32, %c0_33] : memref<8x2x30xf32, #tpu.memory_space<vmem>>, vector<8x2x15xf32>
    tpu.vector_store %arg3[%c0_31, %c0_32, %c0_33], %174 {strides = array<i32>} : memref<8x2x30xf32, #tpu.memory_space<vmem>>, vector<8x2x15xf32>,
    %176 = vector.shape_cast %165 : vector<2x15xf32> to vector<1x2x15xf32>
    %177 = vector.shape_cast %145 : vector<2x15xf32> to vector<1x2x15xf32>
    %178 = vector.shape_cast %125 : vector<2x15xf32> to vector<1x2x15xf32>
    %179 = vector.shape_cast %105 : vector<2x15xf32> to vector<1x2x15xf32>
    %180 = vector.shape_cast %85 : vector<2x15xf32> to vector<1x2x15xf32>
    %181 = vector.shape_cast %65 : vector<2x15xf32> to vector<1x2x15xf32>
    %182 = vector.shape_cast %45 : vector<2x15xf32> to vector<1x2x15xf32>
    %183 = vector.shape_cast %25 : vector<2x15xf32> to vector<1x2x15xf32>
    %184 = tpu.concatenate %176, %177, %178, %179, %180, %181, %182, %183 in 0 : vector<1x2x15xf32>, vector<1x2x15xf32>, vector<1x2x15xf32>, vector<1x2x15xf32>, vector<1x2x15xf32>, vector<1x2x15xf32>, vector<1x2x15xf32>, vector<1x2x15xf32> -> vector<8x2x15xf32>
    %c0_34 = arith.constant 0 : index
    %c0_35 = arith.constant 0 : index
    %c15 = arith.constant 15 : index
    %185 = vector.load %arg3[%c0_34, %c0_35, %c15] : memref<8x2x30xf32, #tpu.memory_space<vmem>>, vector<8x2x15xf32>
    tpu.vector_store %arg3[%c0_34, %c0_35, %c15], %184 {strides = array<i32>} : memref<8x2x30xf32, #tpu.memory_space<vmem>>, vector<8x2x15xf32>,
    %186 = vector.extract_strided_slice %163 {offsets = [0, 0], sizes = [2, 15], strides = [1, 1]} : vector<8x30xf32> to vector<2x15xf32>
    %c0_36 = arith.constant 0 : index
    %c0_37 = arith.constant 0 : index
    %c0_38 = arith.constant 0 : index
    %187 = vector.load %arg4[%c0_36, %c0_37, %c0_38] : memref<2x2x15xf32, #tpu.memory_space<vmem>>, vector<1x2x15xf32>
    %188 = vector.shape_cast %187 : vector<1x2x15xf32> to vector<2x15xf32>
    %189 = vector.shape_cast %186 : vector<2x15xf32> to vector<1x2x15xf32>
    tpu.vector_store %arg4[%c0_36, %c0_37, %c0_38], %189 {strides = array<i32>} : memref<2x2x15xf32, #tpu.memory_space<vmem>>, vector<1x2x15xf32>,
    %190 = vector.extract_strided_slice %163 {offsets = [0, 15], sizes = [2, 15], strides = [1, 1]} : vector<8x30xf32> to vector<2x15xf32>
    %c1 = arith.constant 1 : index
    %c0_39 = arith.constant 0 : index
    %c0_40 = arith.constant 0 : index
    %191 = vector.load %arg4[%c1, %c0_39, %c0_40] : memref<2x2x15xf32, #tpu.memory_space<vmem>>, vector<1x2x15xf32>
    %192 = vector.shape_cast %191 : vector<1x2x15xf32> to vector<2x15xf32>
    %193 = vector.shape_cast %190 : vector<2x15xf32> to vector<1x2x15xf32>
    tpu.vector_store %arg4[%c1, %c0_39, %c0_40], %193 {strides = array<i32>} : memref<2x2x15xf32, #tpu.memory_space<vmem>>, vector<1x2x15xf32>,
    %194 = vector.extract_strided_slice %161 {offsets = [0, 0], sizes = [2, 15], strides = [1, 1]} : vector<8x30xf32> to vector<2x15xf32>
    %c0_41 = arith.constant 0 : index
    %c0_42 = arith.constant 0 : index
    %c0_43 = arith.constant 0 : index
    %195 = vector.load %arg5[%c0_41, %c0_42, %c0_43] : memref<2x2x15xf32, #tpu.memory_space<vmem>>, vector<1x2x15xf32>
    %196 = vector.shape_cast %195 : vector<1x2x15xf32> to vector<2x15xf32>
    %197 = vector.shape_cast %194 : vector<2x15xf32> to vector<1x2x15xf32>
    tpu.vector_store %arg5[%c0_41, %c0_42, %c0_43], %197 {strides = array<i32>} : memref<2x2x15xf32, #tpu.memory_space<vmem>>, vector<1x2x15xf32>,
    %198 = vector.extract_strided_slice %161 {offsets = [0, 15], sizes = [2, 15], strides = [1, 1]} : vector<8x30xf32> to vector<2x15xf32>
    %c1_44 = arith.constant 1 : index
    %c0_45 = arith.constant 0 : index
    %c0_46 = arith.constant 0 : index
    %199 = vector.load %arg5[%c1_44, %c0_45, %c0_46] : memref<2x2x15xf32, #tpu.memory_space<vmem>>, vector<1x2x15xf32>
    %200 = vector.shape_cast %199 : vector<1x2x15xf32> to vector<2x15xf32>
    %201 = vector.shape_cast %198 : vector<2x15xf32> to vector<1x2x15xf32>
    tpu.vector_store %arg5[%c1_44, %c0_45, %c0_46], %201 {strides = array<i32>} : memref<2x2x15xf32, #tpu.memory_space<vmem>>, vector<1x2x15xf32>,
    return
  }
}

</mosaic_0001>

<llo_original>
// kernel: bilstm_forward.1
$region0: #{bilstm_forward.1}
  #allocation0 [shape = 'u32[]', space=smem, size = 0x4, offset = 0x4, fixed_abs, tag = 'smem constant byte address 0x4 - core index']
  #allocation1 [shape = 'u32[144,128]{1,0:T(1,128)}', space=vmem, size = 0x12000, scoped, tag = 'internal scratch']
  %s0 = inlined_call_operand.vmem [shape: f32[64,21], index: 0, kind: input, shape index: {}]
  %s1 = inlined_call_operand.vmem [shape: f32[21,120], index: 1, kind: input, shape index: {}]
  %s2 = inlined_call_operand.vmem [shape: f32[30,120], index: 2, kind: input, shape index: {}]
  %s3 = inlined_call_operand.hbm [shape: f32[8,2,30], index: 3, kind: output, shape index: {0}]
  %s4 = inlined_call_operand.hbm [shape: f32[2,2,15], index: 4, kind: output, shape index: {1}]
  %s5 = inlined_call_operand.hbm [shape: f32[2,2,15], index: 5, kind: output, shape index: {2}]
  %6 = xla_tuple %s3, %s4, %s5
  %s7 = sld [smem:[#allocation0]]
  $region38: #{bilstm_forward.1} parent=0
    _
  %s9 = ssub.s32 1, %s7
  %s10 = scalar_select 0, %s9, %s7
  $region1: #{bilstm_forward.1} parent=0
    #allocation2 [shape = 'u8[8192]{0}', space=vmem, size = 0x2000, scoped, tag = 'output window, operand 0, single buffered']
    #allocation3 [shape = 's32[1]{0}', space=sflag, size = 0x4, scoped, tag = 'scoped memory for bilstm_forward.1']
    #allocation4 [shape = 'u8[2048]{0}', space=vmem, size = 0x800, scoped, tag = 'output window, operand 1, single buffered']
    #allocation5 [shape = 's32[1]{0}', space=sflag, size = 0x4, scoped, tag = 'scoped memory for bilstm_forward.1']
    #allocation6 [shape = 'u8[2048]{0}', space=vmem, size = 0x800, scoped, tag = 'output window, operand 2, single buffered']
    %11 = vsyncpa [#allocation3], 0
    %12 = vsyncpa [#allocation5], 0
    // Predicated region
    $region2: #{bilstm_forward.1} parent=1 // pred_check
      _
    $region3: #{bilstm_forward.1} parent=1 // pred_check_branch
      %14 = sbr.rel (0) target = $region5
    $region4: #{bilstm_forward.1} parent=1 // pred_region
      _
    $region5: #{bilstm_forward.1} parent=1 // pred_fallthru
      _
    // Predicated region
    $region6: #{bilstm_forward.1} parent=1 // pred_check
      _
    $region7: #{bilstm_forward.1} parent=1 // pred_check_branch
      %16 = sbr.rel (0) target = $region9
    $region8: #{bilstm_forward.1} parent=1 // pred_region
      _
    $region9: #{bilstm_forward.1} parent=1 // pred_fallthru
      _
    // Predicated region
    $region10: #{bilstm_forward.1} parent=1 // pred_check
      _
    $region11: #{bilstm_forward.1} parent=1 // pred_check_branch
      %18 = sbr.rel (0) target = $region13
    $region12: #{bilstm_forward.1} parent=1 // pred_region
      _
    $region13: #{bilstm_forward.1} parent=1 // pred_fallthru
      _
    %v19 = vld [vmem:[%s0] sm:$0xff]
    %v20 = vld [vmem:[%s0 + $0x8] sm:$0xff]
    %v21 = vld [vmem:[%s0 + $0x10] sm:$0xff]
    %v22 = vld [vmem:[%s0 + $0x18] sm:$0xff]
    %v23 = vld [vmem:[%s0 + $0x20] sm:$0xff]
    %v24 = vld [vmem:[%s0 + $0x28] sm:$0xff]
    %v25 = vld [vmem:[%s0 + $0x30] sm:$0xff]
    %v26 = vld [vmem:[%s0 + $0x38] sm:$0xff]
    %v27 = vld [vmem:[%s1] sm:$0xff]
    %v28 = vld [vmem:[%s1 + $0x8] sm:$0xff]
    %v29 = vld [vmem:[%s1 + $0x10] sm:$0x1f]
    %vm30 = vcmask 171008
    %v32 = vsel %vm30, %v19, 0
    %v35 = vsel %vm30, %v20, 0
    %v38 = vsel %vm30, %v21, 0
    %v41 = vsel %vm30, %v22, 0
    %v44 = vsel %vm30, %v23, 0
    %v47 = vsel %vm30, %v24, 0
    %v50 = vsel %vm30, %v25, 0
    %v53 = vsel %vm30, %v26, 0
    %vm55 = vcmask 1044480
    %v57 = vsel %vm55, %v29, 0
    %59 = vmatprep.subr.mxu0 0.0
    %60 = vmatpush1.msra.mxu0 %v27
    %61 = vmatprep.subr.mxu0 0.0
    %62 = vmatpush1.msra.mxu0 %v28
    %63 = vmatprep.subr.mxu0 0.0
    %64 = vmatpush1.msra.mxu0 %v57
    %65 = vmatprep.subr.mxu0 0.0
    %66 = vmatpush1.msra.mxu0 0.0
    %67 = vmatprep.subr.mxu0 0.0
    %68 = vmatpush1.msra.mxu0 0.0
    %69 = vmatprep.subr.mxu0 0.0
    %70 = vmatpush1.msra.mxu0 0.0
    %71 = vmatprep.subr.mxu0 0.0
    %72 = vmatpush1.msra.mxu0 0.0
    %73 = vmatprep.subr.mxu0 0.0
    %74 = vmatpush1.msra.mxu0 0.0
    %75 = vmatprep.subr.mxu0 0.0
    %76 = vmatpush1.msra.mxu0 0.0
    %77 = vmatprep.subr.mxu0 0.0
    %78 = vmatpush1.msra.mxu0 0.0
    %79 = vmatprep.subr.mxu0 0.0
    %80 = vmatpush1.msra.mxu0 0.0
    %81 = vmatprep.subr.mxu0 0.0
    %82 = vmatpush1.msra.mxu0 0.0
    %83 = vmatprep.subr.mxu0 0.0
    %84 = vmatpush1.msra.mxu0 0.0
    %85 = vmatprep.subr.mxu0 0.0
    %86 = vmatpush1.msra.mxu0 0.0
    %87 = vmatprep.subr.mxu0 0.0
    %88 = vmatpush1.msra.mxu0 0.0
    %89 = vmatprep.subr.mxu0 0.0
    %90 = vmatpush1.msra.mxu0 0.0
    %91 = vmatprep.subr.mxu0 0.0
    %92 = vmatpush1.msra.mxu0 0.0
    %93 = vmatprep.subr.mxu0 0.0
    %94 = vmatpush1.msra.mxu0 0.0
    %95 = vmatprep.subr.mxu0 0.0
    %96 = vmatpush1.msra.mxu0 0.0
    %97 = vmatprep.subr.mxu0 0.0
    %98 = vmatpush1.msra.mxu0 0.0
    %99 = vmatprep.subr.mxu0 0.0
    %100 = vmatpush1.msra.mxu0 0.0
    %101 = vmatprep.subr.mxu0 0.0
    %102 = vmatpush1.msra.mxu0 0.0
    %103 = vmatprep.subr.mxu0 0.0
    %104 = vmatpush1.msra.mxu0 0.0
    %105 = vmatprep.subr.mxu0 0.0
    %106 = vmatpush1.msra.mxu0 0.0
    %107 = vmatprep.subr.mxu0 0.0
    %108 = vmatpush1.msra.mxu0 0.0
    %109 = vmatprep.subr.mxu0 0.0
    %110 = vmatpush1.msra.mxu0 0.0
    %111 = vmatprep.subr.mxu0 0.0
    %112 = vmatpush1.msra.mxu0 0.0
    %113 = vmatprep.subr.mxu0 0.0
    %114 = vmatpush1.msra.mxu0 0.0
    %115 = vmatprep.subr.mxu0 0.0
    %116 = vmatpush1.msra.mxu0 0.0
    %117 = vmatprep.subr.mxu0 0.0
    %118 = vmatpush1.msra.mxu0 0.0
    %119 = vmatprep.subr.mxu0 0.0
    %120 = vmatpush1.msra.mxu0 0.0
    %121 = vmatprep.subr.mxu0 0.0
    %122 = vmatpush1.msra.mxu0 0.0
    %123 = vmatprep.mubr.f32.mxu0 0.0
    %124 = vmatmul.mubr.f32.gmra.mrb[0].mxu0 %v32
    %v125 = vpop.f32.mrb[0].mxu0
    %v126 = vadd.f32 0.0, %v125
    %v127 = vpop.f32.mrb[0].mxu0
    %128 = vmatprep.mubr.f32.mxu0 0.0
    %129 = vmatmul.mubr.f32.gmra.mrb[0].mxu0 %v35
    %v130 = vpop.f32.mrb[0].mxu0
    %v131 = vadd.f32 0.0, %v130
    %v132 = vpop.f32.mrb[0].mxu0
    %133 = vmatprep.mubr.f32.mxu0 0.0
    %134 = vmatmul.mubr.f32.gmra.mrb[0].mxu0 %v38
    %v135 = vpop.f32.mrb[0].mxu0
    %v136 = vadd.f32 0.0, %v135
    %v137 = vpop.f32.mrb[0].mxu0
    %138 = vmatprep.mubr.f32.mxu0 0.0
    %139 = vmatmul.mubr.f32.gmra.mrb[0].mxu0 %v41
    %v140 = vpop.f32.mrb[0].mxu0
    %v141 = vadd.f32 0.0, %v140
    %v142 = vpop.f32.mrb[0].mxu0
    %143 = vmatprep.mubr.f32.mxu0 0.0
    %144 = vmatmul.mubr.f32.gmra.mrb[0].mxu0 %v44
    %v145 = vpop.f32.mrb[0].mxu0
    %v146 = vadd.f32 0.0, %v145
    %v147 = vpop.f32.mrb[0].mxu0
    %148 = vmatprep.mubr.f32.mxu0 0.0
    %149 = vmatmul.mubr.f32.gmra.mrb[0].mxu0 %v47
    %v150 = vpop.f32.mrb[0].mxu0
    %v151 = vadd.f32 0.0, %v150
    %v152 = vpop.f32.mrb[0].mxu0
    %153 = vmatprep.mubr.f32.mxu0 0.0
    %154 = vmatmul.mubr.f32.gmra.mrb[0].mxu0 %v50
    %v155 = vpop.f32.mrb[0].mxu0
    %v156 = vadd.f32 0.0, %v155
    %v157 = vpop.f32.mrb[0].mxu0
    %158 = vmatprep.mubr.f32.mxu0 0.0
    %159 = vmatmul.mubr.f32.gmra.mrb[0].mxu0 %v53
    %v160 = vpop.f32.mrb[0].mxu0
    %v161 = vadd.f32 0.0, %v160
    %v162 = vpop.f32.mrb[0].mxu0
    %163 = vdwg.mxu0
    %v164 = vld [vmem:[%s2] sm:$0xff]
    %v165 = vld [vmem:[%s2 + $0x8] sm:$0xff]
    %v166 = vld [vmem:[%s2 + $0x10] sm:$0xff]
    %v167 = vld [vmem:[%s2 + $0x18] sm:$0x3f]
    %vm168 = vcmask 244736
    %v170 = vsel %vm168, 0.0, 0
    %vm172 = vcmask 1045504
    %v174 = vsel %vm172, %v167, 0
    %176 = vmatprep.subr.mxu0 0.0
    %177 = vmatpush1.msra.mxu0 %v164
    %178 = vmatprep.subr.mxu0 0.0
    %179 = vmatpush1.msra.mxu0 %v165
    %180 = vmatprep.subr.mxu0 0.0
    %181 = vmatpush1.msra.mxu0 %v166
    %182 = vmatprep.subr.mxu0 0.0
    %183 = vmatpush1.msra.mxu0 %v174
    %184 = vmatprep.subr.mxu0 0.0
    %185 = vmatpush1.msra.mxu0 0.0
    %186 = vmatprep.subr.mxu0 0.0
    %187 = vmatpush1.msra.mxu0 0.0
    %188 = vmatprep.subr.mxu0 0.0
    %189 = vmatpush1.msra.mxu0 0.0
    %190 = vmatprep.subr.mxu0 0.0
    %191 = vmatpush1.msra.mxu0 0.0
    %192 = vmatprep.subr.mxu0 0.0
    %193 = vmatpush1.msra.mxu0 0.0
    %194 = vmatprep.subr.mxu0 0.0
    %195 = vmatpush1.msra.mxu0 0.0
    %196 = vmatprep.subr.mxu0 0.0
    %197 = vmatpush1.msra.mxu0 0.0
    %198 = vmatprep.subr.mxu0 0.0
    %199 = vmatpush1.msra.mxu0 0.0
    %200 = vmatprep.subr.mxu0 0.0
    %201 = vmatpush1.msra.mxu0 0.0
    %202 = vmatprep.subr.mxu0 0.0
    %203 = vmatpush1.msra.mxu0 0.0
    %204 = vmatprep.subr.mxu0 0.0
    %205 = vmatpush1.msra.mxu0 0.0
    %206 = vmatprep.subr.mxu0 0.0
    %207 = vmatpush1.msra.mxu0 0.0
    %208 = vmatprep.subr.mxu0 0.0
    %209 = vmatpush1.msra.mxu0 0.0
    %210 = vmatprep.subr.mxu0 0.0
    %211 = vmatpush1.msra.mxu0 0.0
    %212 = vmatprep.subr.mxu0 0.0
    %213 = vmatpush1.msra.mxu0 0.0
    %214 = vmatprep.subr.mxu0 0.0
    %215 = vmatpush1.msra.mxu0 0.0
    %216 = vmatprep.subr.mxu0 0.0
    %217 = vmatpush1.msra.mxu0 0.0
    %218 = vmatprep.subr.mxu0 0.0
    %219 = vmatpush1.msra.mxu0 0.0
    %220 = vmatprep.subr.mxu0 0.0
    %221 = vmatpush1.msra.mxu0 0.0
    %222 = vmatprep.subr.mxu0 0.0
    %223 = vmatpush1.msra.mxu0 0.0
    %224 = vmatprep.subr.mxu0 0.0
    %225 = vmatpush1.msra.mxu0 0.0
    %226 = vmatprep.subr.mxu0 0.0
    %227 = vmatpush1.msra.mxu0 0.0
    %228 = vmatprep.subr.mxu0 0.0
    %229 = vmatpush1.msra.mxu0 0.0
    %230 = vmatprep.subr.mxu0 0.0
    %231 = vmatpush1.msra.mxu0 0.0
    %232 = vmatprep.subr.mxu0 0.0
    %233 = vmatpush1.msra.mxu0 0.0
    %234 = vmatprep.subr.mxu0 0.0
    %235 = vmatpush1.msra.mxu0 0.0
    %236 = vmatprep.subr.mxu0 0.0
    %237 = vmatpush1.msra.mxu0 0.0
    %238 = vmatprep.subr.mxu0 0.0
    %239 = vmatpush1.msra.mxu0 0.0
    %240 = vmatprep.mubr.f32.mxu0 0.0
    %241 = vmatmul.mubr.f32.gmra.mrb[0].mxu0 %v170
    %v242 = vpop.f32.mrb[0].mxu0
    %v243 = vadd.f32 %v126, %v242
    %v244 = vpop.f32.mrb[0].mxu0
    %245 = vdwg.mxu0
    %v246 = vtanh.pop %v243
    %v247 = vmul.f32 %v246, 0.5
    %v248 = vadd.f32 %v247, 0.5
    %v249 = vmul.f32 %v248, 0.0
    %251 = vrot.lane.b32.xlu0 %v246, 38
    %v252 = vpop.permute.xlu0 %251
    %v254 = vmul.f32 %v248, %v252
    %256 = vrot.lane.b32.xlu0 %v254, 30
    %v257 = vpop.permute.xlu0 %256
    %v259 = vadd.f32 %v249, %v257
    %v260 = vtanh.pop %v259
    %262 = vrot.lane.b32.xlu0 %v260, 30
    %v263 = vpop.permute.xlu0 %262
    %v265 = vmul.f32 %v248, %v263
    %267 = vrot.lane.b32.xlu0 %v265, 68
    %v268 = vpop.permute.xlu0 %267
    %v269 = vsel %vm168, %v268, 0
    %271 = vmatprep.subr.mxu0 0.0
    %272 = vmatpush1.msra.mxu0 %v164
    %273 = vmatprep.subr.mxu0 0.0
    %274 = vmatpush1.msra.mxu0 %v165
    %275 = vmatprep.subr.mxu0 0.0
    %276 = vmatpush1.msra.mxu0 %v166
    %277 = vmatprep.subr.mxu0 0.0
    %278 = vmatpush1.msra.mxu0 %v174
    %279 = vmatprep.subr.mxu0 0.0
    %280 = vmatpush1.msra.mxu0 0.0
    %281 = vmatprep.subr.mxu0 0.0
    %282 = vmatpush1.msra.mxu0 0.0
    %283 = vmatprep.subr.mxu0 0.0
    %284 = vmatpush1.msra.mxu0 0.0
    %285 = vmatprep.subr.mxu0 0.0
    %286 = vmatpush1.msra.mxu0 0.0
    %287 = vmatprep.subr.mxu0 0.0
    %288 = vmatpush1.msra.mxu0 0.0
    %289 = vmatprep.subr.mxu0 0.0
    %290 = vmatpush1.msra.mxu0 0.0
    %291 = vmatprep.subr.mxu0 0.0
    %292 = vmatpush1.msra.mxu0 0.0
    %293 = vmatprep.subr.mxu0 0.0
    %294 = vmatpush1.msra.mxu0 0.0
    %295 = vmatprep.subr.mxu0 0.0
    %296 = vmatpush1.msra.mxu0 0.0
    %297 = vmatprep.subr.mxu0 0.0
    %298 = vmatpush1.msra.mxu0 0.0
    %299 = vmatprep.subr.mxu0 0.0
    %300 = vmatpush1.msra.mxu0 0.0
    %301 = vmatprep.subr.mxu0 0.0
    %302 = vmatpush1.msra.mxu0 0.0
    %303 = vmatprep.subr.mxu0 0.0
    %304 = vmatpush1.msra.mxu0 0.0
    %305 = vmatprep.subr.mxu0 0.0
    %306 = vmatpush1.msra.mxu0 0.0
    %307 = vmatprep.subr.mxu0 0.0
    %308 = vmatpush1.msra.mxu0 0.0
    %309 = vmatprep.subr.mxu0 0.0
    %310 = vmatpush1.msra.mxu0 0.0
    %311 = vmatprep.subr.mxu0 0.0
    %312 = vmatpush1.msra.mxu0 0.0
    %313 = vmatprep.subr.mxu0 0.0
    %314 = vmatpush1.msra.mxu0 0.0
    %315 = vmatprep.subr.mxu0 0.0
    %316 = vmatpush1.msra.mxu0 0.0
    %317 = vmatprep.subr.mxu0 0.0
    %318 = vmatpush1.msra.mxu0 0.0
    %319 = vmatprep.subr.mxu0 0.0
    %320 = vmatpush1.msra.mxu0 0.0
    %321 = vmatprep.subr.mxu0 0.0
    %322 = vmatpush1.msra.mxu0 0.0
    %323 = vmatprep.subr.mxu0 0.0
    %324 = vmatpush1.msra.mxu0 0.0
    %325 = vmatprep.subr.mxu0 0.0
    %326 = vmatpush1.msra.mxu0 0.0
    %327 = vmatprep.subr.mxu0 0.0
    %328 = vmatpush1.msra.mxu0 0.0
    %329 = vmatprep.subr.mxu0 0.0
    %330 = vmatpush1.msra.mxu0 0.0
    %331 = vmatprep.subr.mxu0 0.0
    %332 = vmatpush1.msra.mxu0 0.0
    %333 = vmatprep.subr.mxu0 0.0
    %334 = vmatpush1.msra.mxu0 0.0
    %335 = vmatprep.mubr.f32.mxu0 0.0
    %336 = vmatmul.mubr.f32.gmra.mrb[0].mxu0 %v269
    %v337 = vpop.f32.mrb[0].mxu0
    %v338 = vadd.f32 %v131, %v337
    %v339 = vpop.f32.mrb[0].mxu0
    %340 = vdwg.mxu0
    %v341 = vtanh.pop %v338
    %v342 = vmul.f32 %v341, 0.5
    %v343 = vadd.f32 %v342, 0.5
    %v344 = vmul.f32 %v343, %v259
    %346 = vrot.lane.b32.xlu0 %v341, 38
    %v347 = vpop.permute.xlu0 %346
    %v349 = vmul.f32 %v343, %v347
    %351 = vrot.lane.b32.xlu0 %v349, 30
    %v352 = vpop.permute.xlu0 %351
    %v354 = vadd.f32 %v344, %v352
    %v355 = vtanh.pop %v354
    %357 = vrot.lane.b32.xlu0 %v355, 30
    %v358 = vpop.permute.xlu0 %357
    %v360 = vmul.f32 %v343, %v358
    %362 = vrot.lane.b32.xlu0 %v360, 68
    %v363 = vpop.permute.xlu0 %362
    %v364 = vsel %vm168, %v363, 0
    %366 = vmatprep.subr.mxu0 0.0
    %367 = vmatpush1.msra.mxu0 %v164
    %368 = vmatprep.subr.mxu0 0.0
    %369 = vmatpush1.msra.mxu0 %v165
    %370 = vmatprep.subr.mxu0 0.0
    %371 = vmatpush1.msra.mxu0 %v166
    %372 = vmatprep.subr.mxu0 0.0
    %373 = vmatpush1.msra.mxu0 %v174
    %374 = vmatprep.subr.mxu0 0.0
    %375 = vmatpush1.msra.mxu0 0.0
    %376 = vmatprep.subr.mxu0 0.0
    %377 = vmatpush1.msra.mxu0 0.0
    %378 = vmatprep.subr.mxu0 0.0
    %379 = vmatpush1.msra.mxu0 0.0
    %380 = vmatprep.subr.mxu0 0.0
    %381 = vmatpush1.msra.mxu0 0.0
    %382 = vmatprep.subr.mxu0 0.0
    %383 = vmatpush1.msra.mxu0 0.0
    %384 = vmatprep.subr.mxu0 0.0
    %385 = vmatpush1.msra.mxu0 0.0
    %386 = vmatprep.subr.mxu0 0.0
    %387 = vmatpush1.msra.mxu0 0.0
    %388 = vmatprep.subr.mxu0 0.0
    %389 = vmatpush1.msra.mxu0 0.0
    %390 = vmatprep.subr.mxu0 0.0
    %391 = vmatpush1.msra.mxu0 0.0
    %392 = vmatprep.subr.mxu0 0.0
    %393 = vmatpush1.msra.mxu0 0.0
    %394 = vmatprep.subr.mxu0 0.0
    %395 = vmatpush1.msra.mxu0 0.0
    %396 = vmatprep.subr.mxu0 0.0
    %397 = vmatpush1.msra.mxu0 0.0
    %398 = vmatprep.subr.mxu0 0.0
    %399 = vmatpush1.msra.mxu0 0.0
    %400 = vmatprep.subr.mxu0 0.0
    %401 = vmatpush1.msra.mxu0 0.0
    %402 = vmatprep.subr.mxu0 0.0
    %403 = vmatpush1.msra.mxu0 0.0
    %404 = vmatprep.subr.mxu0 0.0
    %405 = vmatpush1.msra.mxu0 0.0
    %406 = vmatprep.subr.mxu0 0.0
    %407 = vmatpush1.msra.mxu0 0.0
    %408 = vmatprep.subr.mxu0 0.0
    %409 = vmatpush1.msra.mxu0 0.0
    %410 = vmatprep.subr.mxu0 0.0
    %411 = vmatpush1.msra.mxu0 0.0
    %412 = vmatprep.subr.mxu0 0.0
    %413 = vmatpush1.msra.mxu0 0.0
    %414 = vmatprep.subr.mxu0 0.0
    %415 = vmatpush1.msra.mxu0 0.0
    %416 = vmatprep.subr.mxu0 0.0
    %417 = vmatpush1.msra.mxu0 0.0
    %418 = vmatprep.subr.mxu0 0.0
    %419 = vmatpush1.msra.mxu0 0.0
    %420 = vmatprep.subr.mxu0 0.0
    %421 = vmatpush1.msra.mxu0 0.0
    %422 = vmatprep.subr.mxu0 0.0
    %423 = vmatpush1.msra.mxu0 0.0
    %424 = vmatprep.subr.mxu0 0.0
    %425 = vmatpush1.msra.mxu0 0.0
    %426 = vmatprep.subr.mxu0 0.0
    %427 = vmatpush1.msra.mxu0 0.0
    %428 = vmatprep.subr.mxu0 0.0
    %429 = vmatpush1.msra.mxu0 0.0
    %430 = vmatprep.mubr.f32.mxu0 0.0
    %431 = vmatmul.mubr.f32.gmra.mrb[0].mxu0 %v364
    %v432 = vpop.f32.mrb[0].mxu0
    %v433 = vadd.f32 %v136, %v432
    %v434 = vpop.f32.mrb[0].mxu0
    %435 = vdwg.mxu0
    %v436 = vtanh.pop %v433
    %v437 = vmul.f32 %v436, 0.5
    %v438 = vadd.f32 %v437, 0.5
    %v439 = vmul.f32 %v438, %v354
    %441 = vrot.lane.b32.xlu0 %v436, 38
    %v442 = vpop.permute.xlu0 %441
    %v444 = vmul.f32 %v438, %v442
    %446 = vrot.lane.b32.xlu0 %v444, 30
    %v447 = vpop.permute.xlu0 %446
    %v449 = vadd.f32 %v439, %v447
    %v450 = vtanh.pop %v449
    %452 = vrot.lane.b32.xlu0 %v450, 30
    %v453 = vpop.permute.xlu0 %452
    %v455 = vmul.f32 %v438, %v453
    %457 = vrot.lane.b32.xlu0 %v455, 68
    %v458 = vpop.permute.xlu0 %457
    %v459 = vsel %vm168, %v458, 0
    %461 = vmatprep.subr.mxu0 0.0
    %462 = vmatpush1.msra.mxu0 %v164
    %463 = vmatprep.subr.mxu0 0.0
    %464 = vmatpush1.msra.mxu0 %v165
    %465 = vmatprep.subr.mxu0 0.0
    %466 = vmatpush1.msra.mxu0 %v166
    %467 = vmatprep.subr.mxu0 0.0
    %468 = vmatpush1.msra.mxu0 %v174
    %469 = vmatprep.subr.mxu0 0.0
    %470 = vmatpush1.msra.mxu0 0.0
    %471 = vmatprep.subr.mxu0 0.0
    %472 = vmatpush1.msra.mxu0 0.0
    %473 = vmatprep.subr.mxu0 0.0
    %474 = vmatpush1.msra.mxu0 0.0
    %475 = vmatprep.subr.mxu0 0.0
    %476 = vmatpush1.msra.mxu0 0.0
    %477 = vmatprep.subr.mxu0 0.0
    %478 = vmatpush1.msra.mxu0 0.0
    %479 = vmatprep.subr.mxu0 0.0
    %480 = vmatpush1.msra.mxu0 0.0
    %481 = vmatprep.subr.mxu0 0.0
    %482 = vmatpush1.msra.mxu0 0.0
    %483 = vmatprep.subr.mxu0 0.0
    %484 = vmatpush1.msra.mxu0 0.0
    %485 = vmatprep.subr.mxu0 0.0
    %486 = vmatpush1.msra.mxu0 0.0
    %487 = vmatprep.subr.mxu0 0.0
    %488 = vmatpush1.msra.mxu0 0.0
    %489 = vmatprep.subr.mxu0 0.0
    %490 = vmatpush1.msra.mxu0 0.0
    %491 = vmatprep.subr.mxu0 0.0
    %492 = vmatpush1.msra.mxu0 0.0
    %493 = vmatprep.subr.mxu0 0.0
    %494 = vmatpush1.msra.mxu0 0.0
    %495 = vmatprep.subr.mxu0 0.0
    %496 = vmatpush1.msra.mxu0 0.0
    %497 = vmatprep.subr.mxu0 0.0
    %498 = vmatpush1.msra.mxu0 0.0
    %499 = vmatprep.subr.mxu0 0.0
    %500 = vmatpush1.msra.mxu0 0.0
    %501 = vmatprep.subr.mxu0 0.0
    %502 = vmatpush1.msra.mxu0 0.0
    %503 = vmatprep.subr.mxu0 0.0
    %504 = vmatpush1.msra.mxu0 0.0
    %505 = vmatprep.subr.mxu0 0.0
    %506 = vmatpush1.msra.mxu0 0.0
    %507 = vmatprep.subr.mxu0 0.0
    %508 = vmatpush1.msra.mxu0 0.0
    %509 = vmatprep.subr.mxu0 0.0
    %510 = vmatpush1.msra.mxu0 0.0
    %511 = vmatprep.subr.mxu0 0.0
    %512 = vmatpush1.msra.mxu0 0.0
    %513 = vmatprep.subr.mxu0 0.0
    %514 = vmatpush1.msra.mxu0 0.0
    %515 = vmatprep.subr.mxu0 0.0
    %516 = vmatpush1.msra.mxu0 0.0
    %517 = vmatprep.subr.mxu0 0.0
    %518 = vmatpush1.msra.mxu0 0.0
    %519 = vmatprep.subr.mxu0 0.0
    %520 = vmatpush1.msra.mxu0 0.0
    %521 = vmatprep.subr.mxu0 0.0
    %522 = vmatpush1.msra.mxu0 0.0
    %523 = vmatprep.subr.mxu0 0.0
    %524 = vmatpush1.msra.mxu0 0.0
    %525 = vmatprep.mubr.f32.mxu0 0.0
    %526 = vmatmul.mubr.f32.gmra.mrb[0].mxu0 %v459
    %v527 = vpop.f32.mrb[0].mxu0
    %v528 = vadd.f32 %v141, %v527
    %v529 = vpop.f32.mrb[0].mxu0
    %530 = vdwg.mxu0
    %v531 = vtanh.pop %v528
    %v532 = vmul.f32 %v531, 0.5
    %v533 = vadd.f32 %v532, 0.5
    %v534 = vmul.f32 %v533, %v449
    %536 = vrot.lane.b32.xlu0 %v531, 38
    %v537 = vpop.permute.xlu0 %536
    %v539 = vmul.f32 %v533, %v537
    %541 = vrot.lane.b32.xlu0 %v539, 30
    %v542 = vpop.permute.xlu0 %541
    %v544 = vadd.f32 %v534, %v542
    %v545 = vtanh.pop %v544
    %547 = vrot.lane.b32.xlu0 %v545, 30
    %v548 = vpop.permute.xlu0 %547
    %v550 = vmul.f32 %v533, %v548
    %552 = vrot.lane.b32.xlu0 %v550, 68
    %v553 = vpop.permute.xlu0 %552
    %v554 = vsel %vm168, %v553, 0
    %556 = vmatprep.subr.mxu0 0.0
    %557 = vmatpush1.msra.mxu0 %v164
    %558 = vmatprep.subr.mxu0 0.0
    %559 = vmatpush1.msra.mxu0 %v165
    %560 = vmatprep.subr.mxu0 0.0
    %561 = vmatpush1.msra.mxu0 %v166
    %562 = vmatprep.subr.mxu0 0.0
    %563 = vmatpush1.msra.mxu0 %v174
    %564 = vmatprep.subr.mxu0 0.0
    %565 = vmatpush1.msra.mxu0 0.0
    %566 = vmatprep.subr.mxu0 0.0
    %567 = vmatpush1.msra.mxu0 0.0
    %568 = vmatprep.subr.mxu0 0.0
    %569 = vmatpush1.msra.mxu0 0.0
    %570 = vmatprep.subr.mxu0 0.0
    %571 = vmatpush1.msra.mxu0 0.0
    %572 = vmatprep.subr.mxu0 0.0
    %573 = vmatpush1.msra.mxu0 0.0
    %574 = vmatprep.subr.mxu0 0.0
    %575 = vmatpush1.msra.mxu0 0.0
    %576 = vmatprep.subr.mxu0 0.0
    %577 = vmatpush1.msra.mxu0 0.0
    %578 = vmatprep.subr.mxu0 0.0
    %579 = vmatpush1.msra.mxu0 0.0
    %580 = vmatprep.subr.mxu0 0.0
    %581 = vmatpush1.msra.mxu0 0.0
    %582 = vmatprep.subr.mxu0 0.0
    %583 = vmatpush1.msra.mxu0 0.0
    %584 = vmatprep.subr.mxu0 0.0
    %585 = vmatpush1.msra.mxu0 0.0
    %586 = vmatprep.subr.mxu0 0.0
    %587 = vmatpush1.msra.mxu0 0.0
    %588 = vmatprep.subr.mxu0 0.0
    %589 = vmatpush1.msra.mxu0 0.0
    %590 = vmatprep.subr.mxu0 0.0
    %591 = vmatpush1.msra.mxu0 0.0
    %592 = vmatprep.subr.mxu0 0.0
    %593 = vmatpush1.msra.mxu0 0.0
    %594 = vmatprep.subr.mxu0 0.0
    %595 = vmatpush1.msra.mxu0 0.0
    %596 = vmatprep.subr.mxu0 0.0
    %597 = vmatpush1.msra.mxu0 0.0
    %598 = vmatprep.subr.mxu0 0.0
    %599 = vmatpush1.msra.mxu0 0.0
    %600 = vmatprep.subr.mxu0 0.0
    %601 = vmatpush1.msra.mxu0 0.0
    %602 = vmatprep.subr.mxu0 0.0
    %603 = vmatpush1.msra.mxu0 0.0
    %604 = vmatprep.subr.mxu0 0.0
    %605 = vmatpush1.msra.mxu0 0.0
    %606 = vmatprep.subr.mxu0 0.0
    %607 = vmatpush1.msra.mxu0 0.0
    %608 = vmatprep.subr.mxu0 0.0
    %609 = vmatpush1.msra.mxu0 0.0
    %610 = vmatprep.subr.mxu0 0.0
    %611 = vmatpush1.msra.mxu0 0.0
    %612 = vmatprep.subr.mxu0 0.0
    %613 = vmatpush1.msra.mxu0 0.0
    %614 = vmatprep.subr.mxu0 0.0
    %615 = vmatpush1.msra.mxu0 0.0
    %616 = vmatprep.subr.mxu0 0.0
    %617 = vmatpush1.msra.mxu0 0.0
    %618 = vmatprep.subr.mxu0 0.0
    %619 = vmatpush1.msra.mxu0 0.0
    %620 = vmatprep.mubr.f32.mxu0 0.0
    %621 = vmatmul.mubr.f32.gmra.mrb[0].mxu0 %v554
    %v622 = vpop.f32.mrb[0].mxu0
    %v623 = vadd.f32 %v146, %v622
    %v624 = vpop.f32.mrb[0].mxu0
    %625 = vdwg.mxu0
    %v626 = vtanh.pop %v623
    %v627 = vmul.f32 %v626, 0.5
    %v628 = vadd.f32 %v627, 0.5
    %v629 = vmul.f32 %v628, %v544
    %631 = vrot.lane.b32.xlu0 %v626, 38
    %v632 = vpop.permute.xlu0 %631
    %v634 = vmul.f32 %v628, %v632
    %636 = vrot.lane.b32.xlu0 %v634, 30
    %v637 = vpop.permute.xlu0 %636
    %v639 = vadd.f32 %v629, %v637
    %v640 = vtanh.pop %v639
    %642 = vrot.lane.b32.xlu0 %v640, 30
    %v643 = vpop.permute.xlu0 %642
    %v645 = vmul.f32 %v628, %v643
    %647 = vrot.lane.b32.xlu0 %v645, 68
    %v648 = vpop.permute.xlu0 %647
    %v649 = vsel %vm168, %v648, 0
    %651 = vmatprep.subr.mxu0 0.0
    %652 = vmatpush1.msra.mxu0 %v164
    %653 = vmatprep.subr.mxu0 0.0
    %654 = vmatpush1.msra.mxu0 %v165
    %655 = vmatprep.subr.mxu0 0.0
    %656 = vmatpush1.msra.mxu0 %v166
    %657 = vmatprep.subr.mxu0 0.0
    %658 = vmatpush1.msra.mxu0 %v174
    %659 = vmatprep.subr.mxu0 0.0
    %660 = vmatpush1.msra.mxu0 0.0
    %661 = vmatprep.subr.mxu0 0.0
    %662 = vmatpush1.msra.mxu0 0.0
    %663 = vmatprep.subr.mxu0 0.0
    %664 = vmatpush1.msra.mxu0 0.0
    %665 = vmatprep.subr.mxu0 0.0
    %666 = vmatpush1.msra.mxu0 0.0
    %667 = vmatprep.subr.mxu0 0.0
    %668 = vmatpush1.msra.mxu0 0.0
    %669 = vmatprep.subr.mxu0 0.0
    %670 = vmatpush1.msra.mxu0 0.0
    %671 = vmatprep.subr.mxu0 0.0
    %672 = vmatpush1.msra.mxu0 0.0
    %673 = vmatprep.subr.mxu0 0.0
    %674 = vmatpush1.msra.mxu0 0.0
    %675 = vmatprep.subr.mxu0 0.0
    %676 = vmatpush1.msra.mxu0 0.0
    %677 = vmatprep.subr.mxu0 0.0
    %678 = vmatpush1.msra.mxu0 0.0
    %679 = vmatprep.subr.mxu0 0.0
    %680 = vmatpush1.msra.mxu0 0.0
    %681 = vmatprep.subr.mxu0 0.0
    %682 = vmatpush1.msra.mxu0 0.0
    %683 = vmatprep.subr.mxu0 0.0
    %684 = vmatpush1.msra.mxu0 0.0
    %685 = vmatprep.subr.mxu0 0.0
    %686 = vmatpush1.msra.mxu0 0.0
    %687 = vmatprep.subr.mxu0 0.0
    %688 = vmatpush1.msra.mxu0 0.0
    %689 = vmatprep.subr.mxu0 0.0
    %690 = vmatpush1.msra.mxu0 0.0
    %691 = vmatprep.subr.mxu0 0.0
    %692 = vmatpush1.msra.mxu0 0.0
    %693 = vmatprep.subr.mxu0 0.0
    %694 = vmatpush1.msra.mxu0 0.0
    %695 = vmatprep.subr.mxu0 0.0
    %696 = vmatpush1.msra.mxu0 0.0
    %697 = vmatprep.subr.mxu0 0.0
    %698 = vmatpush1.msra.mxu0 0.0
    %699 = vmatprep.subr.mxu0 0.0
    %700 = vmatpush1.msra.mxu0 0.0
    %701 = vmatprep.subr.mxu0 0.0
    %702 = vmatpush1.msra.mxu0 0.0
    %703 = vmatprep.subr.mxu0 0.0
    %704 = vmatpush1.msra.mxu0 0.0
    %705 = vmatprep.subr.mxu0 0.0
    %706 = vmatpush1.msra.mxu0 0.0
    %707 = vmatprep.subr.mxu0 0.0
    %708 = vmatpush1.msra.mxu0 0.0
    %709 = vmatprep.subr.mxu0 0.0
    %710 = vmatpush1.msra.mxu0 0.0
    %711 = vmatprep.subr.mxu0 0.0
    %712 = vmatpush1.msra.mxu0 0.0
    %713 = vmatprep.subr.mxu0 0.0
    %714 = vmatpush1.msra.mxu0 0.0
    %715 = vmatprep.mubr.f32.mxu0 0.0
    %716 = vmatmul.mubr.f32.gmra.mrb[0].mxu0 %v649
    %v717 = vpop.f32.mrb[0].mxu0
    %v718 = vadd.f32 %v151, %v717
    %v719 = vpop.f32.mrb[0].mxu0
    %720 = vdwg.mxu0
    %v721 = vtanh.pop %v718
    %v722 = vmul.f32 %v721, 0.5
    %v723 = vadd.f32 %v722, 0.5
    %v724 = vmul.f32 %v723, %v639
    %726 = vrot.lane.b32.xlu0 %v721, 38
    %v727 = vpop.permute.xlu0 %726
    %v729 = vmul.f32 %v723, %v727
    %731 = vrot.lane.b32.xlu0 %v729, 30
    %v732 = vpop.permute.xlu0 %731
    %v734 = vadd.f32 %v724, %v732
    %v735 = vtanh.pop %v734
    %737 = vrot.lane.b32.xlu0 %v735, 30
    %v738 = vpop.permute.xlu0 %737
    %v740 = vmul.f32 %v723, %v738
    %742 = vrot.lane.b32.xlu0 %v740, 68
    %v743 = vpop.permute.xlu0 %742
    %v744 = vsel %vm168, %v743, 0
    %746 = vmatprep.subr.mxu0 0.0
    %747 = vmatpush1.msra.mxu0 %v164
    %748 = vmatprep.subr.mxu0 0.0
    %749 = vmatpush1.msra.mxu0 %v165
    %750 = vmatprep.subr.mxu0 0.0
    %751 = vmatpush1.msra.mxu0 %v166
    %752 = vmatprep.subr.mxu0 0.0
    %753 = vmatpush1.msra.mxu0 %v174
    %754 = vmatprep.subr.mxu0 0.0
    %755 = vmatpush1.msra.mxu0 0.0
    %756 = vmatprep.subr.mxu0 0.0
    %757 = vmatpush1.msra.mxu0 0.0
    %758 = vmatprep.subr.mxu0 0.0
    %759 = vmatpush1.msra.mxu0 0.0
    %760 = vmatprep.subr.mxu0 0.0
    %761 = vmatpush1.msra.mxu0 0.0
    %762 = vmatprep.subr.mxu0 0.0
    %763 = vmatpush1.msra.mxu0 0.0
    %764 = vmatprep.subr.mxu0 0.0
    %765 = vmatpush1.msra.mxu0 0.0
    %766 = vmatprep.subr.mxu0 0.0
    %767 = vmatpush1.msra.mxu0 0.0
    %768 = vmatprep.subr.mxu0 0.0
    %769 = vmatpush1.msra.mxu0 0.0
    %770 = vmatprep.subr.mxu0 0.0
    %771 = vmatpush1.msra.mxu0 0.0
    %772 = vmatprep.subr.mxu0 0.0
    %773 = vmatpush1.msra.mxu0 0.0
    %774 = vmatprep.subr.mxu0 0.0
    %775 = vmatpush1.msra.mxu0 0.0
    %776 = vmatprep.subr.mxu0 0.0
    %777 = vmatpush1.msra.mxu0 0.0
    %778 = vmatprep.subr.mxu0 0.0
    %779 = vmatpush1.msra.mxu0 0.0
    %780 = vmatprep.subr.mxu0 0.0
    %781 = vmatpush1.msra.mxu0 0.0
    %782 = vmatprep.subr.mxu0 0.0
    %783 = vmatpush1.msra.mxu0 0.0
    %784 = vmatprep.subr.mxu0 0.0
    %785 = vmatpush1.msra.mxu0 0.0
    %786 = vmatprep.subr.mxu0 0.0
    %787 = vmatpush1.msra.mxu0 0.0
    %788 = vmatprep.subr.mxu0 0.0
    %789 = vmatpush1.msra.mxu0 0.0
    %790 = vmatprep.subr.mxu0 0.0
    %791 = vmatpush1.msra.mxu0 0.0
    %792 = vmatprep.subr.mxu0 0.0
    %793 = vmatpush1.msra.mxu0 0.0
    %794 = vmatprep.subr.mxu0 0.0
    %795 = vmatpush1.msra.mxu0 0.0
    %796 = vmatprep.subr.mxu0 0.0
    %797 = vmatpush1.msra.mxu0 0.0
    %798 = vmatprep.subr.mxu0 0.0
    %799 = vmatpush1.msra.mxu0 0.0
    %800 = vmatprep.subr.mxu0 0.0
    %801 = vmatpush1.msra.mxu0 0.0
    %802 = vmatprep.subr.mxu0 0.0
    %803 = vmatpush1.msra.mxu0 0.0
    %804 = vmatprep.subr.mxu0 0.0
    %805 = vmatpush1.msra.mxu0 0.0
    %806 = vmatprep.subr.mxu0 0.0
    %807 = vmatpush1.msra.mxu0 0.0
    %808 = vmatprep.subr.mxu0 0.0
    %809 = vmatpush1.msra.mxu0 0.0
    %810 = vmatprep.mubr.f32.mxu0 0.0
    %811 = vmatmul.mubr.f32.gmra.mrb[0].mxu0 %v744
    %v812 = vpop.f32.mrb[0].mxu0
    %v813 = vadd.f32 %v156, %v812
    %v814 = vpop.f32.mrb[0].mxu0
    %815 = vdwg.mxu0
    %v816 = vtanh.pop %v813
    %v817 = vmul.f32 %v816, 0.5
    %v818 = vadd.f32 %v817, 0.5
    %v819 = vmul.f32 %v818, %v734
    %821 = vrot.lane.b32.xlu0 %v816, 38
    %v822 = vpop.permute.xlu0 %821
    %v824 = vmul.f32 %v818, %v822
    %826 = vrot.lane.b32.xlu0 %v824, 30
    %v827 = vpop.permute.xlu0 %826
    %v829 = vadd.f32 %v819, %v827
    %v830 = vtanh.pop %v829
    %832 = vrot.lane.b32.xlu0 %v830, 30
    %v833 = vpop.permute.xlu0 %832
    %v835 = vmul.f32 %v818, %v833
    %837 = vrot.lane.b32.xlu0 %v835, 68
    %v838 = vpop.permute.xlu0 %837
    %v839 = vsel %vm168, %v838, 0
    %841 = vmatprep.subr.mxu0 0.0
    %842 = vmatpush1.msra.mxu0 %v164
    %843 = vmatprep.subr.mxu0 0.0
    %844 = vmatpush1.msra.mxu0 %v165
    %845 = vmatprep.subr.mxu0 0.0
    %846 = vmatpush1.msra.mxu0 %v166
    %847 = vmatprep.subr.mxu0 0.0
    %848 = vmatpush1.msra.mxu0 %v174
    %849 = vmatprep.subr.mxu0 0.0
    %850 = vmatpush1.msra.mxu0 0.0
    %851 = vmatprep.subr.mxu0 0.0
    %852 = vmatpush1.msra.mxu0 0.0
    %853 = vmatprep.subr.mxu0 0.0
    %854 = vmatpush1.msra.mxu0 0.0
    %855 = vmatprep.subr.mxu0 0.0
    %856 = vmatpush1.msra.mxu0 0.0
    %857 = vmatprep.subr.mxu0 0.0
    %858 = vmatpush1.msra.mxu0 0.0
    %859 = vmatprep.subr.mxu0 0.0
    %860 = vmatpush1.msra.mxu0 0.0
    %861 = vmatprep.subr.mxu0 0.0
    %862 = vmatpush1.msra.mxu0 0.0
    %863 = vmatprep.subr.mxu0 0.0
    %864 = vmatpush1.msra.mxu0 0.0
    %865 = vmatprep.subr.mxu0 0.0
    %866 = vmatpush1.msra.mxu0 0.0
    %867 = vmatprep.subr.mxu0 0.0
    %868 = vmatpush1.msra.mxu0 0.0
    %869 = vmatprep.subr.mxu0 0.0
    %870 = vmatpush1.msra.mxu0 0.0
    %871 = vmatprep.subr.mxu0 0.0
    %872 = vmatpush1.msra.mxu0 0.0
    %873 = vmatprep.subr.mxu0 0.0
    %874 = vmatpush1.msra.mxu0 0.0
    %875 = vmatprep.subr.mxu0 0.0
    %876 = vmatpush1.msra.mxu0 0.0
    %877 = vmatprep.subr.mxu0 0.0
    %878 = vmatpush1.msra.mxu0 0.0
    %879 = vmatprep.subr.mxu0 0.0
    %880 = vmatpush1.msra.mxu0 0.0
    %881 = vmatprep.subr.mxu0 0.0
    %882 = vmatpush1.msra.mxu0 0.0
    %883 = vmatprep.subr.mxu0 0.0
    %884 = vmatpush1.msra.mxu0 0.0
    %885 = vmatprep.subr.mxu0 0.0
    %886 = vmatpush1.msra.mxu0 0.0
    %887 = vmatprep.subr.mxu0 0.0
    %888 = vmatpush1.msra.mxu0 0.0
    %889 = vmatprep.subr.mxu0 0.0
    %890 = vmatpush1.msra.mxu0 0.0
    %891 = vmatprep.subr.mxu0 0.0
    %892 = vmatpush1.msra.mxu0 0.0
    %893 = vmatprep.subr.mxu0 0.0
    %894 = vmatpush1.msra.mxu0 0.0
    %895 = vmatprep.subr.mxu0 0.0
    %896 = vmatpush1.msra.mxu0 0.0
    %897 = vmatprep.subr.mxu0 0.0
    %898 = vmatpush1.msra.mxu0 0.0
    %899 = vmatprep.subr.mxu0 0.0
    %900 = vmatpush1.msra.mxu0 0.0
    %901 = vmatprep.subr.mxu0 0.0
    %902 = vmatpush1.msra.mxu0 0.0
    %903 = vmatprep.subr.mxu0 0.0
    %904 = vmatpush1.msra.mxu0 0.0
    %905 = vmatprep.mubr.f32.mxu0 0.0
    %906 = vmatmul.mubr.f32.gmra.mrb[0].mxu0 %v839
    %v907 = vpop.f32.mrb[0].mxu0
    %v908 = vadd.f32 %v161, %v907
    %v909 = vpop.f32.mrb[0].mxu0
    %910 = vdwg.mxu0
    %v911 = vtanh.pop %v908
    %v912 = vmul.f32 %v911, 0.5
    %v913 = vadd.f32 %v912, 0.5
    %v914 = vmul.f32 %v913, %v829
    %916 = vrot.lane.b32.xlu0 %v911, 38
    %v917 = vpop.permute.xlu0 %916
    %v919 = vmul.f32 %v913, %v917
    %921 = vrot.lane.b32.xlu0 %v919, 30
    %v922 = vpop.permute.xlu0 %921
    %v924 = vadd.f32 %v914, %v922
    %v925 = vtanh.pop %v924
    %927 = vrot.lane.b32.xlu0 %v925, 30
    %v928 = vpop.permute.xlu0 %927
    %v930 = vmul.f32 %v913, %v928
    %932 = vrot.lane.b32.xlu0 %v930, 68
    %v933 = vpop.permute.xlu0 %932
    %vm942 = vcmask 115712
    %943 = vst.msk [vmem:[#allocation2] sm:$0x3] %vm942, %v268
    %944 = vst.msk [vmem:[#allocation2 + $0x2] sm:$0x3] %vm942, %v363
    %945 = vst.msk [vmem:[#allocation2 + $0x4] sm:$0x3] %vm942, %v458
    %946 = vst.msk [vmem:[#allocation2 + $0x6] sm:$0x3] %vm942, %v553
    %947 = vst.msk [vmem:[#allocation2 + $0x8] sm:$0x3] %vm942, %v648
    %948 = vst.msk [vmem:[#allocation2 + $0xa] sm:$0x3] %vm942, %v743
    %949 = vst.msk [vmem:[#allocation2 + $0xc] sm:$0x3] %vm942, %v838
    %950 = vst.msk [vmem:[#allocation2 + $0xe] sm:$0x3] %vm942, %v933
    %vm951 = vcmask 238712
    %952 = vst.msk [vmem:[#allocation2] sm:$0x3] %vm951, %v933
    %953 = vst.msk [vmem:[#allocation2 + $0x2] sm:$0x3] %vm951, %v838
    %954 = vst.msk [vmem:[#allocation2 + $0x4] sm:$0x3] %vm951, %v743
    %955 = vst.msk [vmem:[#allocation2 + $0x6] sm:$0x3] %vm951, %v648
    %956 = vst.msk [vmem:[#allocation2 + $0x8] sm:$0x3] %vm951, %v553
    %957 = vst.msk [vmem:[#allocation2 + $0xa] sm:$0x3] %vm951, %v458
    %958 = vst.msk [vmem:[#allocation2 + $0xc] sm:$0x3] %vm951, %v363
    %959 = vst.msk [vmem:[#allocation2 + $0xe] sm:$0x3] %vm951, %v268
    %960 = vst.msk [vmem:[#allocation4] sm:$0x3] %vm942, %v933
    %961 = vrot.lane.b32.xlu0 %v930, 53
    %v962 = vpop.permute.xlu0 %961
    %s964 = scalar_lea.vmem [#allocation4], 2
    %965 = vst.msk [vmem:[%s964] sm:$0x3] %vm942, %v962
    %967 = vrot.lane.b32.xlu0 %v924, 98
    %v968 = vpop.permute.xlu0 %967
    %970 = vst.msk [vmem:[#allocation6] sm:$0x3] %vm942, %v968
    %971 = vrot.lane.b32.xlu0 %v924, 83
    %v972 = vpop.permute.xlu0 %971
    %s974 = scalar_lea.vmem [#allocation6], 2
    %975 = vst.msk [vmem:[%s974] sm:$0x3] %vm942, %v972
    // Predicated region
    $region14: #{bilstm_forward.1} parent=1 // pred_check
      _
    $region15: #{bilstm_forward.1} parent=1 // pred_check_branch
      %977 = sbr.rel (0) target = $region17
    $region16: #{bilstm_forward.1} parent=1 // pred_region
      %s979 = ssub.s32 256, 256
      %980 = vsyncadd [#allocation3], %s979
      %s981 = sshll.u32 [#allocation2], 4
      %s982 = int_to_ptr.vmem [resolvable:$true] %s981
      %987 = dma.vmem_to_hbm [thread:$0]  %s982, 256, %s3, [#allocation3], 32, 32, 2
    $region17: #{bilstm_forward.1} parent=1 // pred_fallthru
      _
    // Predicated region
    $region18: #{bilstm_forward.1} parent=1 // pred_check
      _
    $region19: #{bilstm_forward.1} parent=1 // pred_check_branch
      %989 = sbr.rel (0) target = $region21
    $region20: #{bilstm_forward.1} parent=1 // pred_region
      %s991 = ssub.s32 64, 64
      %992 = vsyncadd [#allocation5], %s991
      %s993 = sshll.u32 [#allocation4], 4
      %s994 = int_to_ptr.vmem [resolvable:$true] %s993
      %999 = dma.vmem_to_hbm [thread:$0]  %s994, 64, %s4, [#allocation5], 32, 32, 2
    $region21: #{bilstm_forward.1} parent=1 // pred_fallthru
      _
    // Predicated region
    $region22: #{bilstm_forward.1} parent=1 // pred_check
      _
    $region23: #{bilstm_forward.1} parent=1 // pred_check_branch
      %1001 = sbr.rel (0) target = $region25
    $region24: #{bilstm_forward.1} parent=1 // pred_region
      %s1003 = ssub.s32 64, 64
      %1004 = vsyncadd [#allocation5], %s1003
      %s1005 = sshll.u32 [#allocation6], 4
      %s1006 = int_to_ptr.vmem [resolvable:$true] %s1005
      %1011 = dma.vmem_to_hbm [thread:$0]  %s1006, 64, %s5, [#allocation5], 32, 32, 2
    $region25: #{bilstm_forward.1} parent=1 // pred_fallthru
      _
    // Predicated region
    $region26: #{bilstm_forward.1} parent=1 // pred_check
      _
    $region27: #{bilstm_forward.1} parent=1 // pred_check_branch
      %1013 = sbr.rel (0) target = $region29
    $region28: #{bilstm_forward.1} parent=1 // pred_region
      %1014 = dma.done [#allocation3], 256
    $region29: #{bilstm_forward.1} parent=1 // pred_fallthru
      _
    // Predicated region
    $region30: #{bilstm_forward.1} parent=1 // pred_check
      _
    $region31: #{bilstm_forward.1} parent=1 // pred_check_branch
      %1016 = sbr.rel (0) target = $region33
    $region32: #{bilstm_forward.1} parent=1 // pred_region
      %1017 = dma.done [#allocation5], 64
    $region33: #{bilstm_forward.1} parent=1 // pred_fallthru
      _
    // Predicated region
    $region34: #{bilstm_forward.1} parent=1 // pred_check
      _
    $region35: #{bilstm_forward.1} parent=1 // pred_check_branch
      %1019 = sbr.rel (0) target = $region37
    $region36: #{bilstm_forward.1} parent=1 // pred_region
      %1020 = dma.done [#allocation5], 64
    $region37: #{bilstm_forward.1} parent=1 // pred_fallthru
      _
    %1021 = vsyncpa [#allocation3], 1
    %1022 = vsyncpa [#allocation5], 1

</llo_original>
